<compile_context>
chip_gen: v5e
topology: v5e:2x2
jax: 0.10.0
libtpu: 0.0.40
codegen_flags: <defaults>
</compile_context>

<pallas_src>
import math

import numpy as np
import jax
import jax.numpy as jnp
from jax.experimental import pallas as pl
from jax.experimental.pallas import tpu as pltpu  # noqa: F401  (TPU backend import)

# ------------------------- config (matches module invariants) -------------------------
B = 2                 # batch
S = 8                 # q_len == kv_seq_len (prefill, no cache)
H = 64                # hidden_size
NH = 4                # num_attention_heads (== num_key_value_heads)
HD = H // NH          # head_dim = 16
NG = 2                # num_groups
GS = NH // NG         # group_size = 2
RK = 16               # rank_k[i] (all equal); sum(rank_k) = NG * RK
RANK_V = 32           # rank_v
FGD = RANK_V // NG    # fused_group_dim = 16
FUSED = FGD * NH      # fused_hidden_dim = 64
ROPE_THETA = 10000.0

QW = NH * HD          # 64  (q columns)
KLW = NG * RK         # 32  (k-latent columns)
VLW = RANK_V          # 32  (v-latent columns)
NPERM = GS * GS       # 4   (number of (c, j) permutation terms)


# ----------------------------------- fused Pallas kernel -----------------------------------
def _palu_fused_kernel(x_ref, wqkv_ref, ubig_ref, cos_ref, sin_ref,
                       mask_ref, qsel_ref, wostack_ref, o_ref):
    # Shapes: x (B*S, H); wqkv (H, 2*QW+KLW+VLW); ubig (KLW, 2*QW);
    #         cos/sin (B*S, QW); mask (B*S, B*S); qsel (NPERM, B*S, B*S);
    #         wostack (NPERM*NH*FGD, H); o (B*S, H)
    x = x_ref[...]

    # fused projection: q (pre-scaled), rotate_half(q), k-latent, v-latent in ONE MXU pass
    qkv = jnp.dot(x, wqkv_ref[...], preferred_element_type=jnp.float32)   # (B*S, 192)
    q = qkv[:, :QW]                              # scaled q, cols h*HD + d
    qr = qkv[:, QW:2 * QW]                       # rotate_half(scaled q)
    klat = qkv[:, 2 * QW:2 * QW + KLW]           # (B*S, NG*RK)
    vlat = qkv[:, 2 * QW + KLW:]                 # (B*S, NG*FGD)

    # K reconstruction for ALL heads + folded rotate_half in one matmul
    kk = jnp.dot(klat, ubig_ref[...], preferred_element_type=jnp.float32)  # (B*S, 2*QW)
    k = kk[:, :QW]
    kr = kk[:, QW:]

    # RoPE: pure VPU (rotation already baked into the weights)
    cos = cos_ref[...]
    sin = sin_ref[...]
    q_rot = q * cos + qr * sin
    k_rot = k * cos + kr * sin

    mask = mask_ref[...]                  # 0 same-batch, -1e30 cross-batch

    # per-head attention with both batches folded into rows (scale folded into Wq)
    o_heads = []
    for h in range(NH):
        g = h // GS
        qh = q_rot[:, h * HD:(h + 1) * HD]
        kh = k_rot[:, h * HD:(h + 1) * HD]
        s = jnp.dot(qh, kh.T, preferred_element_type=jnp.float32) + mask   # (B*S, B*S)
        s = s - jnp.max(s, axis=-1, keepdims=True)
        p = jnp.exp(s)
        p = p * pl.reciprocal(jnp.sum(p, axis=-1, keepdims=True), approx=True)
        vg = vlat[:, g * FGD:(g + 1) * FGD]
        o_heads.append(jnp.dot(p, vg, preferred_element_type=jnp.float32))  # (B*S, FGD)
    o_cat = jnp.concatenate(o_heads, axis=-1)                               # (B*S, NH*FGD)

    # exact module reshape chain + o_proj, folded into precomputed selection matrices:
    #   out = concat_i(qsel[i] @ o_cat) @ wo_stack
    t = [jnp.dot(qsel_ref[i], o_cat, preferred_element_type=jnp.float32)
         for i in range(NPERM)]
    tall = jnp.concatenate(t, axis=-1)                                      # (B*S, NPERM*NH*FGD)
    o_ref[...] = jnp.dot(tall, wostack_ref[...],
                         preferred_element_type=jnp.float32).astype(o_ref.dtype)


# --------------------------------------- RoPE tables ---------------------------------------
def rope_tables(seq_len, head_dim, theta=ROPE_THETA):
    inv_freq = 1.0 / (theta ** (np.arange(0, head_dim, 2, dtype=np.float32) / head_dim))
    t = np.arange(seq_len, dtype=np.float32)
    freqs = np.outer(t, inv_freq)                       # (S, HD/2)
    emb = np.concatenate([freqs, freqs], axis=-1)       # (S, HD)
    return np.cos(emb).astype(np.float32), np.sin(emb).astype(np.float32)


# ------------------------- one-time operand preparation (load time) -------------------------
def prepare_palu_operands(params):
    Wq = np.asarray(params["Wq"], np.float32)     # (H, NH*HD)
    Wvt = np.asarray(params["Wvt"], np.float32)   # (H, NG*RK)
    Wv = np.asarray(params["Wv"], np.float32)     # (H, RANK_V)
    Uk = np.asarray(params["Uk"], np.float32)     # (NH, RK, HD)
    Wo = np.asarray(params["Wo"], np.float32)     # (FUSED, H)

    # rotate_half as a signed permutation (block-diagonal per head):  rot_half(x) = x @ R
    half = HD // 2
    rot = np.zeros((NH * HD, NH * HD), np.float32)
    for h in range(NH):
        off = h * HD
        for d in range(half):
            rot[off + d + half, off + d] = -1.0     # out[d] = -x[d + half]
        for d in range(half, HD):
            rot[off + d - half, off + d] = 1.0      # out[d] =  x[d - half]

    # fold 1/sqrt(head_dim) into q; fold rotate_half into the weights
    scale = 1.0 / math.sqrt(HD)
    wq_s = Wq * scale
    w_qkv = np.concatenate([wq_s, wq_s @ rot, Wvt, Wv], axis=1)   # (H, 2*QW+KLW+VLW)

    # block-diagonal per-head K reconstruction + folded rotate_half: (NG*RK, 2*NH*HD)
    u_big = np.zeros((NG * RK, NH * HD), np.float32)
    for h in range(NH):
        g = h // GS
        u_big[g * RK:(g + 1) * RK, h * HD:(h + 1) * HD] = Uk[h]
    u_big2 = np.concatenate([u_big, u_big @ rot], axis=1)         # (KLW, 2*QW)

    # cos/sin tiled to the packed (B*S, NH*HD) layout
    cos, sin = rope_tables(S, HD)
    cos_full = np.tile(cos, (B, NH))
    sin_full = np.tile(sin, (B, NH))

    # additive block mask: 0 within a batch, -1e30 across batches
    bmask = np.full((B * S, B * S), -1e30, np.float32)
    for b in range(B):
        bmask[b * S:(b + 1) * S, b * S:(b + 1) * S] = 0.0

    # Fold the module's reshape chain + o_proj:
    #   out[b*S+s] = sum_{c,j} qsel[c*GS+j][b*S+s] @ O_cat @ wo_stack[(c*GS+j)-th row block]
    # where for (s, c): m = GS*s + c, j = m // S, q = m % S
    qsel = np.zeros((NPERM, B * S, B * S), np.float32)
    for c in range(GS):
        for b in range(B):
            for s in range(S):
                m = GS * s + c
                j = m // S
                q = m % S
                idx = c * GS + j
                qsel[idx, b * S + s, b * S + q] = 1.0

    wo_stack = np.zeros((NPERM * NH * FGD, H), np.float32)
    for c in range(GS):
        for j in range(GS):
            idx = c * GS + j
            for g in range(NG):
                h = g * GS + j
                src = c * NG * FGD + g * FGD
                dst = idx * NH * FGD + h * FGD
                wo_stack[dst:dst + FGD, :] = Wo[src:src + FGD, :]

    as_dev = lambda a: jnp.asarray(a, jnp.float32)
    return {
        "w_qkv": as_dev(w_qkv), "u_big": as_dev(u_big2),
        "cos": as_dev(cos_full), "sin": as_dev(sin_full), "bmask": as_dev(bmask),
        "qsel": as_dev(qsel), "wo_stack": as_dev(wo_stack),
    }


# ------------------------------------------ forward ------------------------------------------
@jax.jit
def palu_forward(hidden, ops):
    """Fused Pallas implementation of LlamaAttention_PALU.forward (prefill, no mask/cache)."""
    b, s, h = hidden.shape
    x2 = hidden.reshape(b * s, h)
    out2 = pl.pallas_call(
        _palu_fused_kernel,
        out_shape=jax.ShapeDtypeStruct((b * s, H), hidden.dtype),
    )(x2, ops["w_qkv"], ops["u_big"], ops["cos"], ops["sin"],
      ops["bmask"], ops["qsel"], ops["wo_stack"])
    return out2.reshape(b, s, H)


# -------------------------------------- pure-JAX reference --------------------------------------
def reference_forward(hidden, params):
    b, s, h = hidden.shape
    q = (hidden @ params["Wq"]).reshape(b, s, NH, HD).transpose(0, 2, 1, 3)
    klat = (hidden @ params["Wvt"]).reshape(b, s, NG, RK).transpose(0, 2, 1, 3)
    vlat = (hidden @ params["Wv"]).reshape(b, s, NG, FGD).transpose(0, 2, 1, 3)

    klat_h = jnp.repeat(klat, GS, axis=1)                      # (B, NH, S, RK)
    k = jnp.einsum("bhsr,hrd->bhsd", klat_h, params["Uk"])     # (B, NH, S, HD)

    cos, sin = rope_tables(s, HD)

    def rot_half(x):
        half = x.shape[-1] // 2
        return jnp.concatenate([-x[..., half:], x[..., :half]], axis=-1)

    q_rot = q * cos + rot_half(q) * sin
    k_rot = k * cos + rot_half(k) * sin

    scores = jnp.einsum("bhqd,bhkd->bhqk", q_rot, k_rot) / math.sqrt(HD)
    p = jax.nn.softmax(scores.astype(jnp.float32), axis=-1).astype(hidden.dtype)

    vlat_h = jnp.repeat(vlat, GS, axis=1)                      # (B, NH, S, FGD)
    o = jnp.einsum("bhqk,bhkf->bhqf", p, vlat_h)               # (B, NH, S, FGD)

    # exact module reshape chain
    o = o.reshape(b, NG, GS * s, FGD)
    o = jnp.transpose(o, (0, 2, 1, 3)).reshape(b, s, FUSED)
    return o @ params["Wo"]


# ---------------------------------------------- main ----------------------------------------------
if __name__ == "__main__":
    key = jax.random.PRNGKey(0)
    k_x, k_q, k_vt, k_v, k_u, k_o = jax.random.split(key, 6)

    hidden = jax.random.normal(k_x, (B, S, H), dtype=jnp.float32) * 0.5
    params = {
        "Wq": jax.random.normal(k_q, (H, NH * HD), jnp.float32) / math.sqrt(H),
        "Wvt": jax.random.normal(k_vt, (H, NG * RK), jnp.float32) / math.sqrt(H),
        "Wv": jax.random.normal(k_v, (H, RANK_V), jnp.float32) / math.sqrt(H),
        "Uk": jax.random.normal(k_u, (NH, RK, HD), jnp.float32) / math.sqrt(RK),
        "Wo": jax.random.normal(k_o, (FUSED, H), jnp.float32) / math.sqrt(FUSED),
    }

    ops = prepare_palu_operands(params)

    out = palu_forward(hidden, ops)
    out = jax.block_until_ready(out)

    ref = jax.block_until_ready(reference_forward(hidden, params))
    max_err = float(jnp.max(jnp.abs(out - ref)))
    if max_err > 1e-2:
        raise AssertionError(f"Pallas output mismatch vs reference: max_abs_err={max_err}")

    # TODO(synk): q_len == 1 decode path (recompute_k_gemv), KV-cache update, the optional
    # additive attention_mask (causal masking) and dropout>0 are not implemented here
    # (cache-free, mask-free prefill only -- same scope as the reference above).
    print("KERNEL_OK")
</pallas_src>

<mosaic_0001>
module attributes {stable_mosaic.version = 11 : i64} {
  func.func @_palu_fused_kernel(%arg0: memref<16x64xf32, #tpu.memory_space<vmem>>, %arg1: memref<64x192xf32, #tpu.memory_space<vmem>>, %arg2: memref<32x128xf32, #tpu.memory_space<vmem>>, %arg3: memref<16x64xf32, #tpu.memory_space<vmem>>, %arg4: memref<16x64xf32, #tpu.memory_space<vmem>>, %arg5: memref<16x16xf32, #tpu.memory_space<vmem>>, %arg6: memref<4x16x16xf32, #tpu.memory_space<vmem>>, %arg7: memref<256x64xf32, #tpu.memory_space<vmem>>, %arg8: memref<16x64xf32, #tpu.memory_space<vmem>>) attributes {dimension_semantics = [], scalar_prefetch = 0 : i64, scratch_operands = 0 : i64, tpu.core_type = #tpu.core_type<tc>} {
    %c0 = arith.constant 0 : index
    %c0_0 = arith.constant 0 : index
    %0 = vector.load %arg0[%c0, %c0_0] : memref<16x64xf32, #tpu.memory_space<vmem>>, vector<16x64xf32>
    %c0_1 = arith.constant 0 : index
    %c0_2 = arith.constant 0 : index
    %1 = vector.load %arg1[%c0_1, %c0_2] : memref<64x192xf32, #tpu.memory_space<vmem>>, vector<64x192xf32>
    %cst = arith.constant dense<0.000000e+00> : vector<16x192xf32>
    %2 = tpu.matmul %0, %1, %cst {dimension_numbers = #tpu.dot_dimension_numbers<[1], [0], [0], [1], [0, 0, 1, 1], [], []>} : vector<16x64xf32>, vector<64x192xf32>, vector<16x192xf32> -> vector<16x192xf32>
    %3 = vector.extract_strided_slice %2 {offsets = [0, 0], sizes = [16, 64], strides = [1, 1]} : vector<16x192xf32> to vector<16x64xf32>
    %4 = vector.extract_strided_slice %2 {offsets = [0, 64], sizes = [16, 64], strides = [1, 1]} : vector<16x192xf32> to vector<16x64xf32>
    %5 = vector.extract_strided_slice %2 {offsets = [0, 128], sizes = [16, 32], strides = [1, 1]} : vector<16x192xf32> to vector<16x32xf32>
    %6 = vector.extract_strided_slice %2 {offsets = [0, 160], sizes = [16, 32], strides = [1, 1]} : vector<16x192xf32> to vector<16x32xf32>
    %c0_3 = arith.constant 0 : index
    %c0_4 = arith.constant 0 : index
    %7 = vector.load %arg2[%c0_3, %c0_4] : memref<32x128xf32, #tpu.memory_space<vmem>>, vector<32x128xf32>
    %cst_5 = arith.constant dense<0.000000e+00> : vector<16x128xf32>
    %8 = tpu.matmul %5, %7, %cst_5 {dimension_numbers = #tpu.dot_dimension_numbers<[1], [0], [0], [1], [0, 0, 1, 1], [], []>} : vector<16x32xf32>, vector<32x128xf32>, vector<16x128xf32> -> vector<16x128xf32>
    %9 = vector.extract_strided_slice %8 {offsets = [0, 0], sizes = [16, 64], strides = [1, 1]} : vector<16x128xf32> to vector<16x64xf32>
    %10 = vector.extract_strided_slice %8 {offsets = [0, 64], sizes = [16, 64], strides = [1, 1]} : vector<16x128xf32> to vector<16x64xf32>
    %c0_6 = arith.constant 0 : index
    %c0_7 = arith.constant 0 : index
    %11 = vector.load %arg3[%c0_6, %c0_7] : memref<16x64xf32, #tpu.memory_space<vmem>>, vector<16x64xf32>
    %c0_8 = arith.constant 0 : index
    %c0_9 = arith.constant 0 : index
    %12 = vector.load %arg4[%c0_8, %c0_9] : memref<16x64xf32, #tpu.memory_space<vmem>>, vector<16x64xf32>
    %13 = arith.mulf %3, %11 : vector<16x64xf32>
    %14 = arith.mulf %4, %12 : vector<16x64xf32>
    %15 = arith.addf %13, %14 : vector<16x64xf32>
    %16 = arith.mulf %9, %11 : vector<16x64xf32>
    %17 = arith.mulf %10, %12 : vector<16x64xf32>
    %18 = arith.addf %16, %17 : vector<16x64xf32>
    %c0_10 = arith.constant 0 : index
    %c0_11 = arith.constant 0 : index
    %19 = vector.load %arg5[%c0_10, %c0_11] : memref<16x16xf32, #tpu.memory_space<vmem>>, vector<16x16xf32>
    %20 = vector.extract_strided_slice %15 {offsets = [0, 0], sizes = [16, 16], strides = [1, 1]} : vector<16x64xf32> to vector<16x16xf32>
    %21 = vector.extract_strided_slice %18 {offsets = [0, 0], sizes = [16, 16], strides = [1, 1]} : vector<16x64xf32> to vector<16x16xf32>
    %22 = tpu.transpose %21, [1, 0] : vector<16x16xf32> -> vector<16x16xf32>
    %cst_12 = arith.constant dense<0.000000e+00> : vector<16x16xf32>
    %23 = tpu.matmul %20, %22, %cst_12 {dimension_numbers = #tpu.dot_dimension_numbers<[1], [0], [0], [1], [0, 0, 1, 1], [], []>} : vector<16x16xf32>, vector<16x16xf32>, vector<16x16xf32> -> vector<16x16xf32>
    %24 = arith.addf %23, %19 : vector<16x16xf32>
    %cst_13 = arith.constant dense<0xFF800000> : vector<16xf32>
    %25 = vector.multi_reduction <maximumf>, %24, %cst_13 [1] : vector<16x16xf32> to vector<16xf32>
    %26 = vector.shape_cast %25 : vector<16xf32> to vector<16x1xf32>
    %27 = vector.broadcast %26 : vector<16x1xf32> to vector<16x16xf32>
    %28 = arith.subf %24, %27 : vector<16x16xf32>
    %29 = math.exp %28 : vector<16x16xf32>
    %cst_14 = arith.constant dense<0.000000e+00> : vector<16xf32>
    %30 = vector.multi_reduction <add>, %29, %cst_14 [1] : vector<16x16xf32> to vector<16xf32>
    %31 = vector.shape_cast %30 : vector<16xf32> to vector<16x1xf32>
    %32 = tpu.reciprocal %31 {approx = true} : vector<16x1xf32> -> vector<16x1xf32>
    %33 = vector.broadcast %32 : vector<16x1xf32> to vector<16x16xf32>
    %34 = arith.mulf %29, %33 : vector<16x16xf32>
    %35 = vector.extract_strided_slice %6 {offsets = [0, 0], sizes = [16, 16], strides = [1, 1]} : vector<16x32xf32> to vector<16x16xf32>
    %cst_15 = arith.constant dense<0.000000e+00> : vector<16x16xf32>
    %36 = tpu.matmul %34, %35, %cst_15 {dimension_numbers = #tpu.dot_dimension_numbers<[1], [0], [0], [1], [0, 0, 1, 1], [], []>} : vector<16x16xf32>, vector<16x16xf32>, vector<16x16xf32> -> vector<16x16xf32>
    %37 = vector.extract_strided_slice %15 {offsets = [0, 16], sizes = [16, 16], strides = [1, 1]} : vector<16x64xf32> to vector<16x16xf32>
    %38 = vector.extract_strided_slice %18 {offsets = [0, 16], sizes = [16, 16], strides = [1, 1]} : vector<16x64xf32> to vector<16x16xf32>
    %39 = tpu.transpose %38, [1, 0] : vector<16x16xf32> -> vector<16x16xf32>
    %cst_16 = arith.constant dense<0.000000e+00> : vector<16x16xf32>
    %40 = tpu.matmul %37, %39, %cst_16 {dimension_numbers = #tpu.dot_dimension_numbers<[1], [0], [0], [1], [0, 0, 1, 1], [], []>} : vector<16x16xf32>, vector<16x16xf32>, vector<16x16xf32> -> vector<16x16xf32>
    %41 = arith.addf %40, %19 : vector<16x16xf32>
    %cst_17 = arith.constant dense<0xFF800000> : vector<16xf32>
    %42 = vector.multi_reduction <maximumf>, %41, %cst_17 [1] : vector<16x16xf32> to vector<16xf32>
    %43 = vector.shape_cast %42 : vector<16xf32> to vector<16x1xf32>
    %44 = vector.broadcast %43 : vector<16x1xf32> to vector<16x16xf32>
    %45 = arith.subf %41, %44 : vector<16x16xf32>
    %46 = math.exp %45 : vector<16x16xf32>
    %cst_18 = arith.constant dense<0.000000e+00> : vector<16xf32>
    %47 = vector.multi_reduction <add>, %46, %cst_18 [1] : vector<16x16xf32> to vector<16xf32>
    %48 = vector.shape_cast %47 : vector<16xf32> to vector<16x1xf32>
    %49 = tpu.reciprocal %48 {approx = true} : vector<16x1xf32> -> vector<16x1xf32>
    %50 = vector.broadcast %49 : vector<16x1xf32> to vector<16x16xf32>
    %51 = arith.mulf %46, %50 : vector<16x16xf32>
    %52 = vector.extract_strided_slice %6 {offsets = [0, 0], sizes = [16, 16], strides = [1, 1]} : vector<16x32xf32> to vector<16x16xf32>
    %cst_19 = arith.constant dense<0.000000e+00> : vector<16x16xf32>
    %53 = tpu.matmul %51, %52, %cst_19 {dimension_numbers = #tpu.dot_dimension_numbers<[1], [0], [0], [1], [0, 0, 1, 1], [], []>} : vector<16x16xf32>, vector<16x16xf32>, vector<16x16xf32> -> vector<16x16xf32>
    %54 = vector.extract_strided_slice %15 {offsets = [0, 32], sizes = [16, 16], strides = [1, 1]} : vector<16x64xf32> to vector<16x16xf32>
    %55 = vector.extract_strided_slice %18 {offsets = [0, 32], sizes = [16, 16], strides = [1, 1]} : vector<16x64xf32> to vector<16x16xf32>
    %56 = tpu.transpose %55, [1, 0] : vector<16x16xf32> -> vector<16x16xf32>
    %cst_20 = arith.constant dense<0.000000e+00> : vector<16x16xf32>
    %57 = tpu.matmul %54, %56, %cst_20 {dimension_numbers = #tpu.dot_dimension_numbers<[1], [0], [0], [1], [0, 0, 1, 1], [], []>} : vector<16x16xf32>, vector<16x16xf32>, vector<16x16xf32> -> vector<16x16xf32>
    %58 = arith.addf %57, %19 : vector<16x16xf32>
    %cst_21 = arith.constant dense<0xFF800000> : vector<16xf32>
    %59 = vector.multi_reduction <maximumf>, %58, %cst_21 [1] : vector<16x16xf32> to vector<16xf32>
    %60 = vector.shape_cast %59 : vector<16xf32> to vector<16x1xf32>
    %61 = vector.broadcast %60 : vector<16x1xf32> to vector<16x16xf32>
    %62 = arith.subf %58, %61 : vector<16x16xf32>
    %63 = math.exp %62 : vector<16x16xf32>
    %cst_22 = arith.constant dense<0.000000e+00> : vector<16xf32>
    %64 = vector.multi_reduction <add>, %63, %cst_22 [1] : vector<16x16xf32> to vector<16xf32>
    %65 = vector.shape_cast %64 : vector<16xf32> to vector<16x1xf32>
    %66 = tpu.reciprocal %65 {approx = true} : vector<16x1xf32> -> vector<16x1xf32>
    %67 = vector.broadcast %66 : vector<16x1xf32> to vector<16x16xf32>
    %68 = arith.mulf %63, %67 : vector<16x16xf32>
    %69 = vector.extract_strided_slice %6 {offsets = [0, 16], sizes = [16, 16], strides = [1, 1]} : vector<16x32xf32> to vector<16x16xf32>
    %cst_23 = arith.constant dense<0.000000e+00> : vector<16x16xf32>
    %70 = tpu.matmul %68, %69, %cst_23 {dimension_numbers = #tpu.dot_dimension_numbers<[1], [0], [0], [1], [0, 0, 1, 1], [], []>} : vector<16x16xf32>, vector<16x16xf32>, vector<16x16xf32> -> vector<16x16xf32>
    %71 = vector.extract_strided_slice %15 {offsets = [0, 48], sizes = [16, 16], strides = [1, 1]} : vector<16x64xf32> to vector<16x16xf32>
    %72 = vector.extract_strided_slice %18 {offsets = [0, 48], sizes = [16, 16], strides = [1, 1]} : vector<16x64xf32> to vector<16x16xf32>
    %73 = tpu.transpose %72, [1, 0] : vector<16x16xf32> -> vector<16x16xf32>
    %cst_24 = arith.constant dense<0.000000e+00> : vector<16x16xf32>
    %74 = tpu.matmul %71, %73, %cst_24 {dimension_numbers = #tpu.dot_dimension_numbers<[1], [0], [0], [1], [0, 0, 1, 1], [], []>} : vector<16x16xf32>, vector<16x16xf32>, vector<16x16xf32> -> vector<16x16xf32>
    %75 = arith.addf %74, %19 : vector<16x16xf32>
    %cst_25 = arith.constant dense<0xFF800000> : vector<16xf32>
    %76 = vector.multi_reduction <maximumf>, %75, %cst_25 [1] : vector<16x16xf32> to vector<16xf32>
    %77 = vector.shape_cast %76 : vector<16xf32> to vector<16x1xf32>
    %78 = vector.broadcast %77 : vector<16x1xf32> to vector<16x16xf32>
    %79 = arith.subf %75, %78 : vector<16x16xf32>
    %80 = math.exp %79 : vector<16x16xf32>
    %cst_26 = arith.constant dense<0.000000e+00> : vector<16xf32>
    %81 = vector.multi_reduction <add>, %80, %cst_26 [1] : vector<16x16xf32> to vector<16xf32>
    %82 = vector.shape_cast %81 : vector<16xf32> to vector<16x1xf32>
    %83 = tpu.reciprocal %82 {approx = true} : vector<16x1xf32> -> vector<16x1xf32>
    %84 = vector.broadcast %83 : vector<16x1xf32> to vector<16x16xf32>
    %85 = arith.mulf %80, %84 : vector<16x16xf32>
    %86 = vector.extract_strided_slice %6 {offsets = [0, 16], sizes = [16, 16], strides = [1, 1]} : vector<16x32xf32> to vector<16x16xf32>
    %cst_27 = arith.constant dense<0.000000e+00> : vector<16x16xf32>
    %87 = tpu.matmul %85, %86, %cst_27 {dimension_numbers = #tpu.dot_dimension_numbers<[1], [0], [0], [1], [0, 0, 1, 1], [], []>} : vector<16x16xf32>, vector<16x16xf32>, vector<16x16xf32> -> vector<16x16xf32>
    %88 = tpu.concatenate %36, %53, %70, %87 in 1 : vector<16x16xf32>, vector<16x16xf32>, vector<16x16xf32>, vector<16x16xf32> -> vector<16x64xf32>
    %c0_28 = arith.constant 0 : index
    %c0_29 = arith.constant 0 : index
    %c0_30 = arith.constant 0 : index
    %89 = vector.load %arg6[%c0_28, %c0_29, %c0_30] : memref<4x16x16xf32, #tpu.memory_space<vmem>>, vector<1x16x16xf32>
    %90 = vector.shape_cast %89 : vector<1x16x16xf32> to vector<16x16xf32>
    %cst_31 = arith.constant dense<0.000000e+00> : vector<16x64xf32>
    %91 = tpu.matmul %90, %88, %cst_31 {dimension_numbers = #tpu.dot_dimension_numbers<[1], [0], [0], [1], [0, 0, 1, 1], [], []>} : vector<16x16xf32>, vector<16x64xf32>, vector<16x64xf32> -> vector<16x64xf32>
    %c1 = arith.constant 1 : index
    %c0_32 = arith.constant 0 : index
    %c0_33 = arith.constant 0 : index
    %92 = vector.load %arg6[%c1, %c0_32, %c0_33] : memref<4x16x16xf32, #tpu.memory_space<vmem>>, vector<1x16x16xf32>
    %93 = vector.shape_cast %92 : vector<1x16x16xf32> to vector<16x16xf32>
    %cst_34 = arith.constant dense<0.000000e+00> : vector<16x64xf32>
    %94 = tpu.matmul %93, %88, %cst_34 {dimension_numbers = #tpu.dot_dimension_numbers<[1], [0], [0], [1], [0, 0, 1, 1], [], []>} : vector<16x16xf32>, vector<16x64xf32>, vector<16x64xf32> -> vector<16x64xf32>
    %c2 = arith.constant 2 : index
    %c0_35 = arith.constant 0 : index
    %c0_36 = arith.constant 0 : index
    %95 = vector.load %arg6[%c2, %c0_35, %c0_36] : memref<4x16x16xf32, #tpu.memory_space<vmem>>, vector<1x16x16xf32>
    %96 = vector.shape_cast %95 : vector<1x16x16xf32> to vector<16x16xf32>
    %cst_37 = arith.constant dense<0.000000e+00> : vector<16x64xf32>
    %97 = tpu.matmul %96, %88, %cst_37 {dimension_numbers = #tpu.dot_dimension_numbers<[1], [0], [0], [1], [0, 0, 1, 1], [], []>} : vector<16x16xf32>, vector<16x64xf32>, vector<16x64xf32> -> vector<16x64xf32>
    %c3 = arith.constant 3 : index
    %c0_38 = arith.constant 0 : index
    %c0_39 = arith.constant 0 : index
    %98 = vector.load %arg6[%c3, %c0_38, %c0_39] : memref<4x16x16xf32, #tpu.memory_space<vmem>>, vector<1x16x16xf32>
    %99 = vector.shape_cast %98 : vector<1x16x16xf32> to vector<16x16xf32>
    %cst_40 = arith.constant dense<0.000000e+00> : vector<16x64xf32>
    %100 = tpu.matmul %99, %88, %cst_40 {dimension_numbers = #tpu.dot_dimension_numbers<[1], [0], [0], [1], [0, 0, 1, 1], [], []>} : vector<16x16xf32>, vector<16x64xf32>, vector<16x64xf32> -> vector<16x64xf32>
    %101 = tpu.concatenate %91, %94, %97, %100 in 1 : vector<16x64xf32>, vector<16x64xf32>, vector<16x64xf32>, vector<16x64xf32> -> vector<16x256xf32>
    %c0_41 = arith.constant 0 : index
    %c0_42 = arith.constant 0 : index
    %102 = vector.load %arg7[%c0_41, %c0_42] : memref<256x64xf32, #tpu.memory_space<vmem>>, vector<256x64xf32>
    %cst_43 = arith.constant dense<0.000000e+00> : vector<16x64xf32>
    %103 = tpu.matmul %101, %102, %cst_43 {dimension_numbers = #tpu.dot_dimension_numbers<[1], [0], [0], [1], [0, 0, 1, 1], [], []>} : vector<16x256xf32>, vector<256x64xf32>, vector<16x64xf32> -> vector<16x64xf32>
    %c0_44 = arith.constant 0 : index
    %c0_45 = arith.constant 0 : index
    %104 = vector.load %arg8[%c0_44, %c0_45] : memref<16x64xf32, #tpu.memory_space<vmem>>, vector<16x64xf32>
    tpu.vector_store %arg8[%c0_44, %c0_45], %103 {strides = array<i32>} : memref<16x64xf32, #tpu.memory_space<vmem>>, vector<16x64xf32>,
    return
  }
}

</mosaic_0001>

<llo_original>
// kernel: palu_forward.1
$region0: #{palu_forward.1}
  #allocation0 [shape = 'u32[]', space=smem, size = 0x4, offset = 0x4, fixed_abs, tag = 'smem constant byte address 0x4 - core index']
  #allocation1 [shape = 'u32[72,128]{1,0:T(1,128)}', space=vmem, size = 0x9000, scoped, tag = 'internal scratch']
  %s0 = inlined_call_operand.vmem [shape: f32[16,64], index: 0, kind: input, shape index: {}]
  %s1 = inlined_call_operand.vmem [shape: f32[64,192], index: 1, kind: input, shape index: {}]
  %s2 = inlined_call_operand.vmem [shape: f32[32,128], index: 2, kind: input, shape index: {}]
  %s3 = inlined_call_operand.vmem [shape: f32[16,64], index: 3, kind: input, shape index: {}]
  %s4 = inlined_call_operand.vmem [shape: f32[16,64], index: 4, kind: input, shape index: {}]
  %s5 = inlined_call_operand.vmem [shape: f32[16,16], index: 5, kind: input, shape index: {}]
  %s6 = inlined_call_operand.vmem [shape: f32[4,16,16], index: 6, kind: input, shape index: {}]
  %s7 = inlined_call_operand.vmem [shape: f32[256,64], index: 7, kind: input, shape index: {}]
  %s8 = inlined_call_operand.hbm [shape: f32[16,64], index: 8, kind: output, shape index: {}]
  %s9 = sld [smem:[#allocation0]]
  $region42: #{palu_forward.1} parent=0
    _
  %s11 = ssub.s32 1, %s9
  %s12 = scalar_select 0, %s11, %s9
  $region1: #{palu_forward.1} parent=0
    #allocation2 [shape = 'u8[8192]{0}', space=vmem, size = 0x2000, scoped, tag = 'output window, operand 0, single buffered']
    #allocation3 [shape = 's32[1]{0}', space=sflag, size = 0x4, scoped, tag = 'scoped memory for palu_forward.1']
    %13 = vsyncpa [#allocation3], 0
    // Predicated region
    $region2: #{palu_forward.1} parent=1 // pred_check
      _
    $region3: #{palu_forward.1} parent=1 // pred_check_branch
      %15 = sbr.rel (0) target = $region5
    $region4: #{palu_forward.1} parent=1 // pred_region
      _
    $region5: #{palu_forward.1} parent=1 // pred_fallthru
      _
    // Predicated region
    $region6: #{palu_forward.1} parent=1 // pred_check
      _
    $region7: #{palu_forward.1} parent=1 // pred_check_branch
      %17 = sbr.rel (0) target = $region9
    $region8: #{palu_forward.1} parent=1 // pred_region
      _
    $region9: #{palu_forward.1} parent=1 // pred_fallthru
      _
    // Predicated region
    $region10: #{palu_forward.1} parent=1 // pred_check
      _
    $region11: #{palu_forward.1} parent=1 // pred_check_branch
      %19 = sbr.rel (0) target = $region13
    $region12: #{palu_forward.1} parent=1 // pred_region
      _
    $region13: #{palu_forward.1} parent=1 // pred_fallthru
      _
    // Predicated region
    $region14: #{palu_forward.1} parent=1 // pred_check
      _
    $region15: #{palu_forward.1} parent=1 // pred_check_branch
      %21 = sbr.rel (0) target = $region17
    $region16: #{palu_forward.1} parent=1 // pred_region
      _
    $region17: #{palu_forward.1} parent=1 // pred_fallthru
      _
    // Predicated region
    $region18: #{palu_forward.1} parent=1 // pred_check
      _
    $region19: #{palu_forward.1} parent=1 // pred_check_branch
      %23 = sbr.rel (0) target = $region21
    $region20: #{palu_forward.1} parent=1 // pred_region
      _
    $region21: #{palu_forward.1} parent=1 // pred_fallthru
      _
    // Predicated region
    $region22: #{palu_forward.1} parent=1 // pred_check
      _
    $region23: #{palu_forward.1} parent=1 // pred_check_branch
      %25 = sbr.rel (0) target = $region25
    $region24: #{palu_forward.1} parent=1 // pred_region
      _
    $region25: #{palu_forward.1} parent=1 // pred_fallthru
      _
    // Predicated region
    $region26: #{palu_forward.1} parent=1 // pred_check
      _
    $region27: #{palu_forward.1} parent=1 // pred_check_branch
      %27 = sbr.rel (0) target = $region29
    $region28: #{palu_forward.1} parent=1 // pred_region
      _
    $region29: #{palu_forward.1} parent=1 // pred_fallthru
      _
    // Predicated region
    $region30: #{palu_forward.1} parent=1 // pred_check
      _
    $region31: #{palu_forward.1} parent=1 // pred_check_branch
      %29 = sbr.rel (0) target = $region33
    $region32: #{palu_forward.1} parent=1 // pred_region
      _
    $region33: #{palu_forward.1} parent=1 // pred_fallthru
      _
    %v30 = vld [vmem:[%s0] sm:$0xff]
    %v31 = vld [vmem:[%s0 + $0x8] sm:$0xff]
    %v32 = vld [vmem:[%s1] sm:$0xff]
    %v33 = vld [vmem:[%s1 + $0x8] sm:$0xff]
    %v34 = vld [vmem:[%s1 + $0x10] sm:$0xff]
    %v35 = vld [vmem:[%s1 + $0x18] sm:$0xff]
    %v36 = vld [vmem:[%s1 + $0x20] sm:$0xff]
    %v37 = vld [vmem:[%s1 + $0x28] sm:$0xff]
    %v38 = vld [vmem:[%s1 + $0x30] sm:$0xff]
    %v39 = vld [vmem:[%s1 + $0x38] sm:$0xff]
    %v40 = vld [vmem:[%s1 + $0x40] sm:$0xff]
    %v41 = vld [vmem:[%s1 + $0x48] sm:$0xff]
    %v42 = vld [vmem:[%s1 + $0x50] sm:$0xff]
    %v43 = vld [vmem:[%s1 + $0x58] sm:$0xff]
    %v44 = vld [vmem:[%s1 + $0x60] sm:$0xff]
    %v45 = vld [vmem:[%s1 + $0x68] sm:$0xff]
    %v46 = vld [vmem:[%s1 + $0x70] sm:$0xff]
    %v47 = vld [vmem:[%s1 + $0x78] sm:$0xff]
    %vm48 = vcmask 523264
    %v50 = vsel %vm48, %v30, 0
    %v53 = vsel %vm48, %v31, 0
    %55 = vmatpush.msra.mxu0 0.0
    %56 = vmatpush.msra.mxu0 0.0
    %57 = vmatpush.msra.mxu0 0.0
    %58 = vmatpush.msra.mxu0 0.0
    %59 = vmatpush.msra.mxu0 0.0
    %60 = vmatpush.msra.mxu0 0.0
    %61 = vmatpush.msra.mxu0 0.0
    %62 = vmatpush.msra.mxu0 0.0
    %63 = vmatpush.msra.mxu0 %v46
    %64 = vmatpush.msra.mxu0 %v44
    %65 = vmatpush.msra.mxu0 %v42
    %66 = vmatpush.msra.mxu0 %v40
    %67 = vmatpush.msra.mxu0 %v38
    %68 = vmatpush.msra.mxu0 %v36
    %69 = vmatpush.msra.mxu0 %v34
    %70 = vmatpush.msra.mxu0 %v32
    %71 = vmatmul.f32.gmra.mxu0 %v50
    %v72 = vpop.f32.mrf.mxu0
    %v73 = vadd.f32 0.0, %v72
    %74 = vmatmul.f32.gmra.mxu0 %v53
    %v75 = vpop.f32.mrf.mxu0
    %v76 = vadd.f32 0.0, %v75
    %77 = vdwg.mxu0
    %78 = vmatpush.msra.mxu0 0.0
    %79 = vmatpush.msra.mxu0 0.0
    %80 = vmatpush.msra.mxu0 0.0
    %81 = vmatpush.msra.mxu0 0.0
    %82 = vmatpush.msra.mxu0 0.0
    %83 = vmatpush.msra.mxu0 0.0
    %84 = vmatpush.msra.mxu0 0.0
    %85 = vmatpush.msra.mxu0 0.0
    %86 = vmatpush.msra.mxu0 %v47
    %87 = vmatpush.msra.mxu0 %v45
    %88 = vmatpush.msra.mxu0 %v43
    %89 = vmatpush.msra.mxu0 %v41
    %90 = vmatpush.msra.mxu0 %v39
    %91 = vmatpush.msra.mxu0 %v37
    %92 = vmatpush.msra.mxu0 %v35
    %93 = vmatpush.msra.mxu0 %v33
    %94 = vmatmul.f32.gmra.mxu0 %v50
    %v95 = vpop.f32.mrf.mxu0
    %v96 = vadd.f32 0.0, %v95
    %97 = vmatmul.f32.gmra.mxu0 %v53
    %v98 = vpop.f32.mrf.mxu0
    %v99 = vadd.f32 0.0, %v98
    %100 = vdwg.mxu0
    %v101 = vld [vmem:[%s2] sm:$0xff]
    %v102 = vld [vmem:[%s2 + $0x8] sm:$0xff]
    %v103 = vld [vmem:[%s2 + $0x10] sm:$0xff]
    %v104 = vld [vmem:[%s2 + $0x18] sm:$0xff]
    %vm105 = vcmask 261120
    %v107 = vsel %vm105, %v96, 0
    %v110 = vsel %vm105, %v99, 0
    %112 = vmatpush.msra.mxu0 0.0
    %113 = vmatpush.msra.mxu0 0.0
    %114 = vmatpush.msra.mxu0 0.0
    %115 = vmatpush.msra.mxu0 0.0
    %116 = vmatpush.msra.mxu0 0.0
    %117 = vmatpush.msra.mxu0 0.0
    %118 = vmatpush.msra.mxu0 0.0
    %119 = vmatpush.msra.mxu0 0.0
    %120 = vmatpush.msra.mxu0 0.0
    %121 = vmatpush.msra.mxu0 0.0
    %122 = vmatpush.msra.mxu0 0.0
    %123 = vmatpush.msra.mxu0 0.0
    %124 = vmatpush.msra.mxu0 %v104
    %125 = vmatpush.msra.mxu0 %v103
    %126 = vmatpush.msra.mxu0 %v102
    %127 = vmatpush.msra.mxu0 %v101
    %128 = vmatmul.f32.gmra.mxu0 %v107
    %v129 = vpop.f32.mrf.mxu0
    %v130 = vadd.f32 0.0, %v129
    %131 = vmatmul.f32.gmra.mxu0 %v110
    %v132 = vpop.f32.mrf.mxu0
    %v133 = vadd.f32 0.0, %v132
    %134 = vdwg.mxu0
    %v135 = vld [vmem:[%s3] sm:$0xff]
    %v136 = vld [vmem:[%s3 + $0x8] sm:$0xff]
    %v137 = vld [vmem:[%s4] sm:$0xff]
    %v138 = vld [vmem:[%s4 + $0x8] sm:$0xff]
    %v139 = vmul.f32 %v73, %v135
    %v140 = vmul.f32 %v76, %v136
    %143 = vrot.lane.b32.xlu0 %v137, 64
    %v144 = vpop.permute.xlu0 %143
    %145 = vrot.lane.b32.xlu0 %v138, 64
    %v146 = vpop.permute.xlu0 %145
    %v149 = vmul.f32 %v73, %v144
    %v150 = vmul.f32 %v76, %v146
    %153 = vrot.lane.b32.xlu0 %v149, 64
    %v154 = vpop.permute.xlu0 %153
    %155 = vrot.lane.b32.xlu0 %v150, 64
    %v156 = vpop.permute.xlu0 %155
    %v159 = vadd.f32 %v139, %v154
    %v160 = vadd.f32 %v140, %v156
    %v161 = vmul.f32 %v130, %v135
    %v162 = vmul.f32 %v133, %v136
    %v163 = vmul.f32 %v130, %v144
    %v164 = vmul.f32 %v133, %v146
    %167 = vrot.lane.b32.xlu0 %v163, 64
    %v168 = vpop.permute.xlu0 %167
    %169 = vrot.lane.b32.xlu0 %v164, 64
    %v170 = vpop.permute.xlu0 %169
    %v173 = vadd.f32 %v161, %v168
    %v174 = vadd.f32 %v162, %v170
    %v175 = vld [vmem:[%s5] sm:$0xff]
    %v176 = vld [vmem:[%s5 + $0x8] sm:$0xff]
    %vm177 = vcmask 130048
    %v179 = vsel %vm177, %v159, 0
    %v182 = vsel %vm177, %v160, 0
    %v185 = vsel %vm177, %v173, 0
    %v188 = vsel %vm177, %v174, 0
    %190 = vmatpush.xpose.msra.mxu0 0.0
    %191 = vmatpush.xpose.msra.mxu0 0.0
    %192 = vmatpush.xpose.msra.mxu0 0.0
    %193 = vmatpush.xpose.msra.mxu0 0.0
    %194 = vmatpush.xpose.msra.mxu0 0.0
    %195 = vmatpush.xpose.msra.mxu0 0.0
    %196 = vmatpush.xpose.msra.mxu0 0.0
    %197 = vmatpush.xpose.msra.mxu0 0.0
    %198 = vmatpush.xpose.msra.mxu0 0.0
    %199 = vmatpush.xpose.msra.mxu0 0.0
    %200 = vmatpush.xpose.msra.mxu0 0.0
    %201 = vmatpush.xpose.msra.mxu0 0.0
    %202 = vmatpush.xpose.msra.mxu0 0.0
    %203 = vmatpush.xpose.msra.mxu0 0.0
    %204 = vmatpush.xpose.msra.mxu0 %v188
    %205 = vmatpush.xpose.msra.mxu0 %v185
    %206 = vmatmul.f32.gmra.mxu0 %v179
    %v207 = vpop.f32.mrf.mxu0
    %v208 = vadd.f32 %v175, %v207
    %209 = vmatmul.f32.gmra.mxu0 %v182
    %v210 = vpop.f32.mrf.mxu0
    %v211 = vadd.f32 %v176, %v210
    %212 = vdwg.mxu0
    %v213 = vsel %vm177, %v208, -inf
    %214 = vmax.xlane.f32.xlu0 %v213
    %v215 = vpop.xlane.xlu0 %214
    %v216 = vsel %vm177, %v211, -inf
    %217 = vmax.xlane.f32.xlu0 %v216
    %v218 = vpop.xlane.xlu0 %217
    %v219 = vsub.f32 %v208, %v215
    %v220 = vsub.f32 %v211, %v218
    %v221 = vmul.f32 %v219, 1.442695
    %v222 = vpow.pop %v221
    %v223 = vmul.f32 %v220, 1.442695
    %v224 = vpow.pop %v223
    %v225 = vsel %vm177, %v222, 0.0
    %226 = vadd.xlane.f32.xlu0 %v225
    %v227 = vpop.xlane.xlu0 %226
    %v228 = vsel %vm177, %v224, 0.0
    %229 = vadd.xlane.f32.xlu0 %v228
    %v230 = vpop.xlane.xlu0 %229
    %v231 = vrcp.pop %v227
    %v232 = vrcp.pop %v230
    %v233 = vmul.f32 %v222, %v231
    %v234 = vmul.f32 %v224, %v232
    %235 = vrot.lane.b32.xlu0 %v96, 96
    %v236 = vpop.permute.xlu0 %235
    %237 = vrot.lane.b32.xlu0 %v99, 96
    %v238 = vpop.permute.xlu0 %237
    %v242 = vsel %vm177, %v233, 0
    %v245 = vsel %vm177, %v234, 0
    %247 = vmatpush.msra.mxu0 0.0
    %248 = vmatpush.msra.mxu0 0.0
    %249 = vmatpush.msra.mxu0 0.0
    %250 = vmatpush.msra.mxu0 0.0
    %251 = vmatpush.msra.mxu0 0.0
    %252 = vmatpush.msra.mxu0 0.0
    %253 = vmatpush.msra.mxu0 0.0
    %254 = vmatpush.msra.mxu0 0.0
    %255 = vmatpush.msra.mxu0 0.0
    %256 = vmatpush.msra.mxu0 0.0
    %257 = vmatpush.msra.mxu0 0.0
    %258 = vmatpush.msra.mxu0 0.0
    %259 = vmatpush.msra.mxu0 0.0
    %260 = vmatpush.msra.mxu0 0.0
    %261 = vmatpush.msra.mxu0 %v238
    %262 = vmatpush.msra.mxu0 %v236
    %263 = vmatmul.f32.gmra.mxu0 %v242
    %v264 = vpop.f32.mrf.mxu0
    %v265 = vadd.f32 0.0, %v264
    %266 = vmatmul.f32.gmra.mxu0 %v245
    %v267 = vpop.f32.mrf.mxu0
    %v268 = vadd.f32 0.0, %v267
    %269 = vdwg.mxu0
    %270 = vrot.lane.b32.xlu0 %v159, 112
    %v271 = vpop.permute.xlu0 %270
    %272 = vrot.lane.b32.xlu0 %v160, 112
    %v273 = vpop.permute.xlu0 %272
    %274 = vrot.lane.b32.xlu0 %v173, 112
    %v275 = vpop.permute.xlu0 %274
    %276 = vrot.lane.b32.xlu0 %v174, 112
    %v277 = vpop.permute.xlu0 %276
    %v278 = vsel %vm177, %v271, 0
    %v280 = vsel %vm177, %v273, 0
    %v282 = vsel %vm177, %v275, 0
    %v284 = vsel %vm177, %v277, 0
    %286 = vmatpush.xpose.msra.mxu0 0.0
    %287 = vmatpush.xpose.msra.mxu0 0.0
    %288 = vmatpush.xpose.msra.mxu0 0.0
    %289 = vmatpush.xpose.msra.mxu0 0.0
    %290 = vmatpush.xpose.msra.mxu0 0.0
    %291 = vmatpush.xpose.msra.mxu0 0.0
    %292 = vmatpush.xpose.msra.mxu0 0.0
    %293 = vmatpush.xpose.msra.mxu0 0.0
    %294 = vmatpush.xpose.msra.mxu0 0.0
    %295 = vmatpush.xpose.msra.mxu0 0.0
    %296 = vmatpush.xpose.msra.mxu0 0.0
    %297 = vmatpush.xpose.msra.mxu0 0.0
    %298 = vmatpush.xpose.msra.mxu0 0.0
    %299 = vmatpush.xpose.msra.mxu0 0.0
    %300 = vmatpush.xpose.msra.mxu0 %v284
    %301 = vmatpush.xpose.msra.mxu0 %v282
    %302 = vmatmul.f32.gmra.mxu0 %v278
    %v303 = vpop.f32.mrf.mxu0
    %v304 = vadd.f32 %v175, %v303
    %305 = vmatmul.f32.gmra.mxu0 %v280
    %v306 = vpop.f32.mrf.mxu0
    %v307 = vadd.f32 %v176, %v306
    %308 = vdwg.mxu0
    %v309 = vsel %vm177, %v304, -inf
    %310 = vmax.xlane.f32.xlu0 %v309
    %v311 = vpop.xlane.xlu0 %310
    %v312 = vsel %vm177, %v307, -inf
    %313 = vmax.xlane.f32.xlu0 %v312
    %v314 = vpop.xlane.xlu0 %313
    %v315 = vsub.f32 %v304, %v311
    %v316 = vsub.f32 %v307, %v314
    %v317 = vmul.f32 %v315, 1.442695
    %v318 = vpow.pop %v317
    %v319 = vmul.f32 %v316, 1.442695
    %v320 = vpow.pop %v319
    %v321 = vsel %vm177, %v318, 0.0
    %322 = vadd.xlane.f32.xlu0 %v321
    %v323 = vpop.xlane.xlu0 %322
    %v324 = vsel %vm177, %v320, 0.0
    %325 = vadd.xlane.f32.xlu0 %v324
    %v326 = vpop.xlane.xlu0 %325
    %v327 = vrcp.pop %v323
    %v328 = vrcp.pop %v326
    %v329 = vmul.f32 %v318, %v327
    %v330 = vmul.f32 %v320, %v328
    %v332 = vsel %vm177, %v329, 0
    %v335 = vsel %vm177, %v330, 0
    %337 = vmatpush.msra.mxu0 0.0
    %338 = vmatpush.msra.mxu0 0.0
    %339 = vmatpush.msra.mxu0 0.0
    %340 = vmatpush.msra.mxu0 0.0
    %341 = vmatpush.msra.mxu0 0.0
    %342 = vmatpush.msra.mxu0 0.0
    %343 = vmatpush.msra.mxu0 0.0
    %344 = vmatpush.msra.mxu0 0.0
    %345 = vmatpush.msra.mxu0 0.0
    %346 = vmatpush.msra.mxu0 0.0
    %347 = vmatpush.msra.mxu0 0.0
    %348 = vmatpush.msra.mxu0 0.0
    %349 = vmatpush.msra.mxu0 0.0
    %350 = vmatpush.msra.mxu0 0.0
    %351 = vmatpush.msra.mxu0 %v238
    %352 = vmatpush.msra.mxu0 %v236
    %353 = vmatmul.f32.gmra.mxu0 %v332
    %v354 = vpop.f32.mrf.mxu0
    %v355 = vadd.f32 0.0, %v354
    %356 = vmatmul.f32.gmra.mxu0 %v335
    %v357 = vpop.f32.mrf.mxu0
    %v358 = vadd.f32 0.0, %v357
    %359 = vdwg.mxu0
    %360 = vrot.lane.b32.xlu0 %v159, 96
    %v361 = vpop.permute.xlu0 %360
    %362 = vrot.lane.b32.xlu0 %v160, 96
    %v363 = vpop.permute.xlu0 %362
    %364 = vrot.lane.b32.xlu0 %v173, 96
    %v365 = vpop.permute.xlu0 %364
    %366 = vrot.lane.b32.xlu0 %v174, 96
    %v367 = vpop.permute.xlu0 %366
    %v368 = vsel %vm177, %v361, 0
    %v370 = vsel %vm177, %v363, 0
    %v372 = vsel %vm177, %v365, 0
    %v374 = vsel %vm177, %v367, 0
    %376 = vmatpush.xpose.msra.mxu0 0.0
    %377 = vmatpush.xpose.msra.mxu0 0.0
    %378 = vmatpush.xpose.msra.mxu0 0.0
    %379 = vmatpush.xpose.msra.mxu0 0.0
    %380 = vmatpush.xpose.msra.mxu0 0.0
    %381 = vmatpush.xpose.msra.mxu0 0.0
    %382 = vmatpush.xpose.msra.mxu0 0.0
    %383 = vmatpush.xpose.msra.mxu0 0.0
    %384 = vmatpush.xpose.msra.mxu0 0.0
    %385 = vmatpush.xpose.msra.mxu0 0.0
    %386 = vmatpush.xpose.msra.mxu0 0.0
    %387 = vmatpush.xpose.msra.mxu0 0.0
    %388 = vmatpush.xpose.msra.mxu0 0.0
    %389 = vmatpush.xpose.msra.mxu0 0.0
    %390 = vmatpush.xpose.msra.mxu0 %v374
    %391 = vmatpush.xpose.msra.mxu0 %v372
    %392 = vmatmul.f32.gmra.mxu0 %v368
    %v393 = vpop.f32.mrf.mxu0
    %v394 = vadd.f32 %v175, %v393
    %395 = vmatmul.f32.gmra.mxu0 %v370
    %v396 = vpop.f32.mrf.mxu0
    %v397 = vadd.f32 %v176, %v396
    %398 = vdwg.mxu0
    %v399 = vsel %vm177, %v394, -inf
    %400 = vmax.xlane.f32.xlu0 %v399
    %v401 = vpop.xlane.xlu0 %400
    %v402 = vsel %vm177, %v397, -inf
    %403 = vmax.xlane.f32.xlu0 %v402
    %v404 = vpop.xlane.xlu0 %403
    %v405 = vsub.f32 %v394, %v401
    %v406 = vsub.f32 %v397, %v404
    %v407 = vmul.f32 %v405, 1.442695
    %v408 = vpow.pop %v407
    %v409 = vmul.f32 %v406, 1.442695
    %v410 = vpow.pop %v409
    %v411 = vsel %vm177, %v408, 0.0
    %412 = vadd.xlane.f32.xlu0 %v411
    %v413 = vpop.xlane.xlu0 %412
    %v414 = vsel %vm177, %v410, 0.0
    %415 = vadd.xlane.f32.xlu0 %v414
    %v416 = vpop.xlane.xlu0 %415
    %v417 = vrcp.pop %v413
    %v418 = vrcp.pop %v416
    %v419 = vmul.f32 %v408, %v417
    %v420 = vmul.f32 %v410, %v418
    %421 = vrot.lane.b32.xlu0 %v96, 80
    %v422 = vpop.permute.xlu0 %421
    %423 = vrot.lane.b32.xlu0 %v99, 80
    %v424 = vpop.permute.xlu0 %423
    %v428 = vsel %vm177, %v419, 0
    %v431 = vsel %vm177, %v420, 0
    %433 = vmatpush.msra.mxu0 0.0
    %434 = vmatpush.msra.mxu0 0.0
    %435 = vmatpush.msra.mxu0 0.0
    %436 = vmatpush.msra.mxu0 0.0
    %437 = vmatpush.msra.mxu0 0.0
    %438 = vmatpush.msra.mxu0 0.0
    %439 = vmatpush.msra.mxu0 0.0
    %440 = vmatpush.msra.mxu0 0.0
    %441 = vmatpush.msra.mxu0 0.0
    %442 = vmatpush.msra.mxu0 0.0
    %443 = vmatpush.msra.mxu0 0.0
    %444 = vmatpush.msra.mxu0 0.0
    %445 = vmatpush.msra.mxu0 0.0
    %446 = vmatpush.msra.mxu0 0.0
    %447 = vmatpush.msra.mxu0 %v424
    %448 = vmatpush.msra.mxu0 %v422
    %449 = vmatmul.f32.gmra.mxu0 %v428
    %v450 = vpop.f32.mrf.mxu0
    %v451 = vadd.f32 0.0, %v450
    %452 = vmatmul.f32.gmra.mxu0 %v431
    %v453 = vpop.f32.mrf.mxu0
    %v454 = vadd.f32 0.0, %v453
    %455 = vdwg.mxu0
    %456 = vrot.lane.b32.xlu0 %v159, 80
    %v457 = vpop.permute.xlu0 %456
    %458 = vrot.lane.b32.xlu0 %v160, 80
    %v459 = vpop.permute.xlu0 %458
    %460 = vrot.lane.b32.xlu0 %v173, 80
    %v461 = vpop.permute.xlu0 %460
    %462 = vrot.lane.b32.xlu0 %v174, 80
    %v463 = vpop.permute.xlu0 %462
    %v464 = vsel %vm177, %v457, 0
    %v466 = vsel %vm177, %v459, 0
    %v468 = vsel %vm177, %v461, 0
    %v470 = vsel %vm177, %v463, 0
    %472 = vmatpush.xpose.msra.mxu0 0.0
    %473 = vmatpush.xpose.msra.mxu0 0.0
    %474 = vmatpush.xpose.msra.mxu0 0.0
    %475 = vmatpush.xpose.msra.mxu0 0.0
    %476 = vmatpush.xpose.msra.mxu0 0.0
    %477 = vmatpush.xpose.msra.mxu0 0.0
    %478 = vmatpush.xpose.msra.mxu0 0.0
    %479 = vmatpush.xpose.msra.mxu0 0.0
    %480 = vmatpush.xpose.msra.mxu0 0.0
    %481 = vmatpush.xpose.msra.mxu0 0.0
    %482 = vmatpush.xpose.msra.mxu0 0.0
    %483 = vmatpush.xpose.msra.mxu0 0.0
    %484 = vmatpush.xpose.msra.mxu0 0.0
    %485 = vmatpush.xpose.msra.mxu0 0.0
    %486 = vmatpush.xpose.msra.mxu0 %v470
    %487 = vmatpush.xpose.msra.mxu0 %v468
    %488 = vmatmul.f32.gmra.mxu0 %v464
    %v489 = vpop.f32.mrf.mxu0
    %v490 = vadd.f32 %v175, %v489
    %491 = vmatmul.f32.gmra.mxu0 %v466
    %v492 = vpop.f32.mrf.mxu0
    %v493 = vadd.f32 %v176, %v492
    %494 = vdwg.mxu0
    %v495 = vsel %vm177, %v490, -inf
    %496 = vmax.xlane.f32.xlu0 %v495
    %v497 = vpop.xlane.xlu0 %496
    %v498 = vsel %vm177, %v493, -inf
    %499 = vmax.xlane.f32.xlu0 %v498
    %v500 = vpop.xlane.xlu0 %499
    %v501 = vsub.f32 %v490, %v497
    %v502 = vsub.f32 %v493, %v500
    %v503 = vmul.f32 %v501, 1.442695
    %v504 = vpow.pop %v503
    %v505 = vmul.f32 %v502, 1.442695
    %v506 = vpow.pop %v505
    %v507 = vsel %vm177, %v504, 0.0
    %508 = vadd.xlane.f32.xlu0 %v507
    %v509 = vpop.xlane.xlu0 %508
    %v510 = vsel %vm177, %v506, 0.0
    %511 = vadd.xlane.f32.xlu0 %v510
    %v512 = vpop.xlane.xlu0 %511
    %v513 = vrcp.pop %v509
    %v514 = vrcp.pop %v512
    %v515 = vmul.f32 %v504, %v513
    %v516 = vmul.f32 %v506, %v514
    %v518 = vsel %vm177, %v515, 0
    %v521 = vsel %vm177, %v516, 0
    %523 = vmatpush.msra.mxu0 0.0
    %524 = vmatpush.msra.mxu0 0.0
    %525 = vmatpush.msra.mxu0 0.0
    %526 = vmatpush.msra.mxu0 0.0
    %527 = vmatpush.msra.mxu0 0.0
    %528 = vmatpush.msra.mxu0 0.0
    %529 = vmatpush.msra.mxu0 0.0
    %530 = vmatpush.msra.mxu0 0.0
    %531 = vmatpush.msra.mxu0 0.0
    %532 = vmatpush.msra.mxu0 0.0
    %533 = vmatpush.msra.mxu0 0.0
    %534 = vmatpush.msra.mxu0 0.0
    %535 = vmatpush.msra.mxu0 0.0
    %536 = vmatpush.msra.mxu0 0.0
    %537 = vmatpush.msra.mxu0 %v424
    %538 = vmatpush.msra.mxu0 %v422
    %539 = vmatmul.f32.gmra.mxu0 %v518
    %v540 = vpop.f32.mrf.mxu0
    %v541 = vadd.f32 0.0, %v540
    %542 = vmatmul.f32.gmra.mxu0 %v521
    %v543 = vpop.f32.mrf.mxu0
    %v544 = vadd.f32 0.0, %v543
    %545 = vdwg.mxu0
    %548 = vrot.lane.b32.xlu0 %v355, 16
    %v549 = vpop.permute.xlu0 %548
    %550 = vrot.lane.b32.xlu0 %v358, 16
    %v551 = vpop.permute.xlu0 %550
    %556 = vrot.lane.b32.xlu0 %v451, 32
    %v557 = vpop.permute.xlu0 %556
    %558 = vrot.lane.b32.xlu0 %v454, 32
    %v559 = vpop.permute.xlu0 %558
    %564 = vrot.lane.b32.xlu0 %v541, 48
    %v565 = vpop.permute.xlu0 %564
    %566 = vrot.lane.b32.xlu0 %v544, 48
    %v567 = vpop.permute.xlu0 %566
    %v570 = vsel %vm177, %v265, %v549
    %v571 = vsel %vm177, %v268, %v551
    %v572 = vsel %vm105, %v570, %v557
    %v573 = vsel %vm105, %v571, %v559
    %vm574 = vcmask 392192
    %v575 = vsel %vm574, %v572, %v565
    %v576 = vsel %vm574, %v573, %v567
    %v577 = vld [vmem:[%s6] sm:$0xff]
    %v578 = vld [vmem:[%s6 + $0x8] sm:$0xff]
    %v580 = vsel %vm177, %v577, 0
    %v583 = vsel %vm177, %v578, 0
    %585 = vmatpush.msra.mxu0 0.0
    %586 = vmatpush.msra.mxu0 0.0
    %587 = vmatpush.msra.mxu0 0.0
    %588 = vmatpush.msra.mxu0 0.0
    %589 = vmatpush.msra.mxu0 0.0
    %590 = vmatpush.msra.mxu0 0.0
    %591 = vmatpush.msra.mxu0 0.0
    %592 = vmatpush.msra.mxu0 0.0
    %593 = vmatpush.msra.mxu0 0.0
    %594 = vmatpush.msra.mxu0 0.0
    %595 = vmatpush.msra.mxu0 0.0
    %596 = vmatpush.msra.mxu0 0.0
    %597 = vmatpush.msra.mxu0 0.0
    %598 = vmatpush.msra.mxu0 0.0
    %599 = vmatpush.msra.mxu0 %v576
    %600 = vmatpush.msra.mxu0 %v575
    %601 = vmatmul.f32.gmra.mxu0 %v580
    %v602 = vpop.f32.mrf.mxu0
    %v603 = vadd.f32 0.0, %v602
    %604 = vmatmul.f32.gmra.mxu0 %v583
    %v605 = vpop.f32.mrf.mxu0
    %v606 = vadd.f32 0.0, %v605
    %607 = vdwg.mxu0
    %s608 = scalar_lea.vmem %s6, 16
    %v609 = vld [vmem:[%s608] sm:$0xff]
    %v610 = vld [vmem:[%s608 + $0x8] sm:$0xff]
    %v612 = vsel %vm177, %v609, 0
    %v615 = vsel %vm177, %v610, 0
    %617 = vmatpush.msra.mxu0 0.0
    %618 = vmatpush.msra.mxu0 0.0
    %619 = vmatpush.msra.mxu0 0.0
    %620 = vmatpush.msra.mxu0 0.0
    %621 = vmatpush.msra.mxu0 0.0
    %622 = vmatpush.msra.mxu0 0.0
    %623 = vmatpush.msra.mxu0 0.0
    %624 = vmatpush.msra.mxu0 0.0
    %625 = vmatpush.msra.mxu0 0.0
    %626 = vmatpush.msra.mxu0 0.0
    %627 = vmatpush.msra.mxu0 0.0
    %628 = vmatpush.msra.mxu0 0.0
    %629 = vmatpush.msra.mxu0 0.0
    %630 = vmatpush.msra.mxu0 0.0
    %631 = vmatpush.msra.mxu0 %v576
    %632 = vmatpush.msra.mxu0 %v575
    %633 = vmatmul.f32.gmra.mxu0 %v612
    %v634 = vpop.f32.mrf.mxu0
    %v635 = vadd.f32 0.0, %v634
    %636 = vmatmul.f32.gmra.mxu0 %v615
    %v637 = vpop.f32.mrf.mxu0
    %v638 = vadd.f32 0.0, %v637
    %639 = vdwg.mxu0
    %s640 = scalar_lea.vmem %s6, 32
    %v641 = vld [vmem:[%s640] sm:$0xff]
    %v642 = vld [vmem:[%s640 + $0x8] sm:$0xff]
    %v644 = vsel %vm177, %v641, 0
    %v647 = vsel %vm177, %v642, 0
    %649 = vmatpush.msra.mxu0 0.0
    %650 = vmatpush.msra.mxu0 0.0
    %651 = vmatpush.msra.mxu0 0.0
    %652 = vmatpush.msra.mxu0 0.0
    %653 = vmatpush.msra.mxu0 0.0
    %654 = vmatpush.msra.mxu0 0.0
    %655 = vmatpush.msra.mxu0 0.0
    %656 = vmatpush.msra.mxu0 0.0
    %657 = vmatpush.msra.mxu0 0.0
    %658 = vmatpush.msra.mxu0 0.0
    %659 = vmatpush.msra.mxu0 0.0
    %660 = vmatpush.msra.mxu0 0.0
    %661 = vmatpush.msra.mxu0 0.0
    %662 = vmatpush.msra.mxu0 0.0
    %663 = vmatpush.msra.mxu0 %v576
    %664 = vmatpush.msra.mxu0 %v575
    %665 = vmatmul.f32.gmra.mxu0 %v644
    %v666 = vpop.f32.mrf.mxu0
    %v667 = vadd.f32 0.0, %v666
    %668 = vmatmul.f32.gmra.mxu0 %v647
    %v669 = vpop.f32.mrf.mxu0
    %v670 = vadd.f32 0.0, %v669
    %671 = vdwg.mxu0
    %s672 = scalar_lea.vmem %s6, 48
    %v673 = vld [vmem:[%s672] sm:$0xff]
    %v674 = vld [vmem:[%s672 + $0x8] sm:$0xff]
    %v676 = vsel %vm177, %v673, 0
    %v679 = vsel %vm177, %v674, 0
    %681 = vmatpush.msra.mxu0 0.0
    %682 = vmatpush.msra.mxu0 0.0
    %683 = vmatpush.msra.mxu0 0.0
    %684 = vmatpush.msra.mxu0 0.0
    %685 = vmatpush.msra.mxu0 0.0
    %686 = vmatpush.msra.mxu0 0.0
    %687 = vmatpush.msra.mxu0 0.0
    %688 = vmatpush.msra.mxu0 0.0
    %689 = vmatpush.msra.mxu0 0.0
    %690 = vmatpush.msra.mxu0 0.0
    %691 = vmatpush.msra.mxu0 0.0
    %692 = vmatpush.msra.mxu0 0.0
    %693 = vmatpush.msra.mxu0 0.0
    %694 = vmatpush.msra.mxu0 0.0
    %695 = vmatpush.msra.mxu0 %v576
    %696 = vmatpush.msra.mxu0 %v575
    %697 = vmatmul.f32.gmra.mxu0 %v676
    %v698 = vpop.f32.mrf.mxu0
    %v699 = vadd.f32 0.0, %v698
    %700 = vmatmul.f32.gmra.mxu0 %v679
    %v701 = vpop.f32.mrf.mxu0
    %v702 = vadd.f32 0.0, %v701
    %703 = vdwg.mxu0
    %706 = vrot.lane.b32.xlu0 %v635, 64
    %v707 = vpop.permute.xlu0 %706
    %708 = vrot.lane.b32.xlu0 %v638, 64
    %v709 = vpop.permute.xlu0 %708
    %714 = vrot.lane.b32.xlu0 %v699, 64
    %v715 = vpop.permute.xlu0 %714
    %716 = vrot.lane.b32.xlu0 %v702, 64
    %v717 = vpop.permute.xlu0 %716
    %v720 = vsel %vm48, %v603, %v707
    %v721 = vsel %vm48, %v606, %v709
    %v722 = vsel %vm48, %v667, %v715
    %v723 = vsel %vm48, %v670, %v717
    %v724 = vld [vmem:[%s7] sm:$0xff]
    %v725 = vld [vmem:[%s7 + $0x8] sm:$0xff]
    %v726 = vld [vmem:[%s7 + $0x10] sm:$0xff]
    %v727 = vld [vmem:[%s7 + $0x18] sm:$0xff]
    %v728 = vld [vmem:[%s7 + $0x20] sm:$0xff]
    %v729 = vld [vmem:[%s7 + $0x28] sm:$0xff]
    %v730 = vld [vmem:[%s7 + $0x30] sm:$0xff]
    %v731 = vld [vmem:[%s7 + $0x38] sm:$0xff]
    %v732 = vld [vmem:[%s7 + $0x40] sm:$0xff]
    %v733 = vld [vmem:[%s7 + $0x48] sm:$0xff]
    %v734 = vld [vmem:[%s7 + $0x50] sm:$0xff]
    %v735 = vld [vmem:[%s7 + $0x58] sm:$0xff]
    %v736 = vld [vmem:[%s7 + $0x60] sm:$0xff]
    %v737 = vld [vmem:[%s7 + $0x68] sm:$0xff]
    %v738 = vld [vmem:[%s7 + $0x70] sm:$0xff]
    %v739 = vld [vmem:[%s7 + $0x78] sm:$0xff]
    %v740 = vld [vmem:[%s7 + $0x80] sm:$0xff]
    %v741 = vld [vmem:[%s7 + $0x88] sm:$0xff]
    %v742 = vld [vmem:[%s7 + $0x90] sm:$0xff]
    %v743 = vld [vmem:[%s7 + $0x98] sm:$0xff]
    %v744 = vld [vmem:[%s7 + $0xa0] sm:$0xff]
    %v745 = vld [vmem:[%s7 + $0xa8] sm:$0xff]
    %v746 = vld [vmem:[%s7 + $0xb0] sm:$0xff]
    %v747 = vld [vmem:[%s7 + $0xb8] sm:$0xff]
    %v748 = vld [vmem:[%s7 + $0xc0] sm:$0xff]
    %v749 = vld [vmem:[%s7 + $0xc8] sm:$0xff]
    %v750 = vld [vmem:[%s7 + $0xd0] sm:$0xff]
    %v751 = vld [vmem:[%s7 + $0xd8] sm:$0xff]
    %v752 = vld [vmem:[%s7 + $0xe0] sm:$0xff]
    %v753 = vld [vmem:[%s7 + $0xe8] sm:$0xff]
    %v754 = vld [vmem:[%s7 + $0xf0] sm:$0xff]
    %v755 = vld [vmem:[%s7 + $0xf8] sm:$0xff]
    %756 = vmatpush.msra.mxu0 %v739
    %757 = vmatpush.msra.mxu0 %v738
    %758 = vmatpush.msra.mxu0 %v737
    %759 = vmatpush.msra.mxu0 %v736
    %760 = vmatpush.msra.mxu0 %v735
    %761 = vmatpush.msra.mxu0 %v734
    %762 = vmatpush.msra.mxu0 %v733
    %763 = vmatpush.msra.mxu0 %v732
    %764 = vmatpush.msra.mxu0 %v731
    %765 = vmatpush.msra.mxu0 %v730
    %766 = vmatpush.msra.mxu0 %v729
    %767 = vmatpush.msra.mxu0 %v728
    %768 = vmatpush.msra.mxu0 %v727
    %769 = vmatpush.msra.mxu0 %v726
    %770 = vmatpush.msra.mxu0 %v725
    %771 = vmatpush.msra.mxu0 %v724
    %772 = vmatmul.f32.gmra.mxu0 %v720
    %v773 = vpop.f32.mrf.mxu0
    %v774 = vadd.f32 0.0, %v773
    %775 = vmatmul.f32.gmra.mxu0 %v721
    %v776 = vpop.f32.mrf.mxu0
    %v777 = vadd.f32 0.0, %v776
    %778 = vdwg.mxu0
    %779 = vmatpush.msra.mxu0 %v755
    %780 = vmatpush.msra.mxu0 %v754
    %781 = vmatpush.msra.mxu0 %v753
    %782 = vmatpush.msra.mxu0 %v752
    %783 = vmatpush.msra.mxu0 %v751
    %784 = vmatpush.msra.mxu0 %v750
    %785 = vmatpush.msra.mxu0 %v749
    %786 = vmatpush.msra.mxu0 %v748
    %787 = vmatpush.msra.mxu0 %v747
    %788 = vmatpush.msra.mxu0 %v746
    %789 = vmatpush.msra.mxu0 %v745
    %790 = vmatpush.msra.mxu0 %v744
    %791 = vmatpush.msra.mxu0 %v743
    %792 = vmatpush.msra.mxu0 %v742
    %793 = vmatpush.msra.mxu0 %v741
    %794 = vmatpush.msra.mxu0 %v740
    %795 = vmatmul.f32.gmra.mxu0 %v722
    %v796 = vpop.f32.mrf.mxu0
    %v797 = vadd.f32 %v774, %v796
    %798 = vmatmul.f32.gmra.mxu0 %v723
    %v799 = vpop.f32.mrf.mxu0
    %v800 = vadd.f32 %v777, %v799
    %801 = vdwg.mxu0
    %802 = vst.msk [vmem:[#allocation2] sm:$0xff] %vm48, %v797
    %803 = vst.msk [vmem:[#allocation2 + $0x8] sm:$0xff] %vm48, %v800
    // Predicated region
    $region34: #{palu_forward.1} parent=1 // pred_check
      _
    $region35: #{palu_forward.1} parent=1 // pred_check_branch
      %805 = sbr.rel (0) target = $region37
    $region36: #{palu_forward.1} parent=1 // pred_region
      %807 = vsyncadd [#allocation3], 0
      %s808 = sshll.u32 [#allocation2], 4
      %s809 = int_to_ptr.vmem [resolvable:$true] %s808
      %s810 = sshll.u32 %s8, 4
      %s811 = int_to_ptr.hbm [resolvable:$true] %s810
      %816 = dma.vmem_to_hbm [thread:$0]  %s809, 256, %s811, [#allocation3], 128, 128, 8
    $region37: #{palu_forward.1} parent=1 // pred_fallthru
      _
    // Predicated region
    $region38: #{palu_forward.1} parent=1 // pred_check
      _
    $region39: #{palu_forward.1} parent=1 // pred_check_branch
      %818 = sbr.rel (0) target = $region41
    $region40: #{palu_forward.1} parent=1 // pred_region
      %820 = dma.done [#allocation3], 256
    $region41: #{palu_forward.1} parent=1 // pred_fallthru
      _
    %821 = vsyncpa [#allocation3], 1

</llo_original>
